<compile_context>
chip_gen: v6e
topology: v6e:2x2x1
jax: 0.10.0
libtpu: 0.0.40
codegen_flags: <defaults>
</compile_context>

<pallas_src>
import jax
import jax.numpy as jnp
from jax import lax
from jax.experimental import pallas as pl
from jax.experimental.pallas import tpu as pltpu

_MIB = 1024 * 1024


def _round_up(x, m):
    return -(-x // m) * m


def _vmem_limit(est_bytes):
    # Generous margin, clamped to a value legal on every generation
    # (v7x physical VMEM is 64 MiB; v5e/v6e have 128 MiB).
    return int(min(64 * _MIB, max(32 * _MIB, int(1.5 * est_bytes))))


def _pick_tm(M, tm_max=512):
    """Largest row tile <= tm_max that divides M (M is always a multiple of 8)."""
    tm = min(tm_max, M)
    while M % tm:
        tm -= 8
    return tm


def _probe_buffered_consts():
    """pl.Buffered(1) single-buffers constant-index operands (halves their VMEM
    footprint).  Probe once; fall back to default double buffering if this jax
    build rejects buffer_count=1."""
    try:
        def k(w_ref, o_ref):
            o_ref[...] = w_ref[...] * 2.0

        out = pl.pallas_call(
            k,
            out_shape=jax.ShapeDtypeStruct((8, 128), jnp.float32),
            grid=(1,),
            in_specs=[pl.BlockSpec((8, 128), lambda i: (0, 0),
                                   pipeline_mode=pl.Buffered(1))],
            out_specs=pl.BlockSpec((8, 128), lambda i: (0, 0)),
        )(jnp.ones((8, 128), jnp.float32))
        out = jax.block_until_ready(out)
        return bool((out == 2.0).all())
    except Exception:
        return False


_USE_BUFFERED_CONSTS = _probe_buffered_consts()


def _const_spec(block_shape, index_map):
    """BlockSpec for a constant-index operand (weights / biases)."""
    if _USE_BUFFERED_CONSTS:
        return pl.BlockSpec(block_shape, index_map, pipeline_mode=pl.Buffered(1))
    return pl.BlockSpec(block_shape, index_map)


# ----------------------------------------------------------------------------
# Kernel 1: hoisted input projection, one fused matmul for both directions.
#   gates = x @ [Wih_f | Wih_b] + [b_f | b_b]   ->  gx[0] = fwd gates, gx[1] = bwd gates
# ----------------------------------------------------------------------------
def _input_proj_kernel(x_ref, w_ref, b_ref, o_ref):
    gates = jnp.dot(x_ref[...], w_ref[...], preferred_element_type=jnp.float32)
    gates = gates + b_ref[...]
    G = o_ref.shape[-1]                       # 4*Hp (lane-dense multiple of 128)
    o_ref[0] = gates[:, :G].astype(o_ref.dtype)
    o_ref[1] = gates[:, G:].astype(o_ref.dtype)


def input_projection(x2d, wih_cat, bias_cat, *, out_dtype):
    M, nIn = x2d.shape
    G2 = wih_cat.shape[1]                     # 8*Hp
    G = G2 // 2
    tm = _pick_tm(M)
    st = jnp.dtype(out_dtype).itemsize
    est = (2 * tm * nIn * 4 + 2 * nIn * G2 * 4 + 2 * G2 * 4
           + 2 * 2 * tm * G * st)
    return pl.pallas_call(
        _input_proj_kernel,
        out_shape=jax.ShapeDtypeStruct((2, M, G), out_dtype),
        grid=(M // tm,),
        in_specs=[
            pl.BlockSpec((tm, nIn), lambda i: (i, 0)),
            _const_spec((nIn, G2), lambda i: (0, 0)),
            _const_spec((1, G2), lambda i: (0, 0)),
        ],
        out_specs=pl.BlockSpec((2, tm, G), lambda i: (0, i, 0)),
        compiler_params=pltpu.CompilerParams(
            dimension_semantics=("parallel",),
            vmem_limit_bytes=_vmem_limit(est)),
    )(x2d, wih_cat, bias_cat)


# ----------------------------------------------------------------------------
# Kernel 2: time-chunked bidirectional recurrence.
#   grid = (direction, time-chunk).  Per grid step: C unrolled timesteps of one
#   direction, one dense (b,H')@(H',4H') dot per step, h/c in VMEM scratch.
# ----------------------------------------------------------------------------
def _sigmoid(z):
    return 1.0 / (1.0 + jnp.exp(-z))


def _bilstm_rec_kernel(gx_ref, whh_ref, out_ref, h_scr, c_scr):
    d = pl.program_id(0)              # 0 = forward chain, 1 = backward chain
    t = pl.program_id(1)              # time-chunk index along this chain

    @pl.when(t == 0)
    def _():
        h_scr[...] = jnp.zeros_like(h_scr)
        c_scr[...] = jnp.zeros_like(c_scr)

    C = gx_ref.shape[0]
    Hp = h_scr.shape[-1]

    def step(j, carry):
        # forward walks the chunk j = 0..C-1; backward walks it in reverse.
        r = j + d * (C - 1 - 2 * j)
        gates = jnp.dot(h_scr[...], whh_ref[d],
                        preferred_element_type=jnp.float32)
        gates = gates + gx_ref[r].astype(jnp.float32)
        # PyTorch gate order: i, f, g, o.  (bf16 nonlinearities are a possible
        # v6e/v7x EUP tweak if profiling shows the EUP binding; kept f32 here.)
        i = _sigmoid(gates[:, 0 * Hp:1 * Hp])
        f = _sigmoid(gates[:, 1 * Hp:2 * Hp])
        g = jnp.tanh(gates[:, 2 * Hp:3 * Hp])
        o = _sigmoid(gates[:, 3 * Hp:4 * Hp])
        c_new = f * c_scr[...] + i * g
        h_new = o * jnp.tanh(c_new)
        h_scr[...] = h_new
        c_scr[...] = c_new
        out_ref[r] = h_new.astype(out_ref.dtype)
        return carry

    lax.fori_loop(0, C, step, 0, unroll=True)


def bilstm_recurrence(gx, whh, *, chunk, out_dtype):
    # gx: (2, T_pad, b_pad, 4H')   whh: (2, H', 4H')
    _, T_pad, b_pad, G = gx.shape
    Hp = G // 4
    C = chunk
    nchunks = T_pad // C
    st = jnp.dtype(gx.dtype).itemsize
    ot = jnp.dtype(out_dtype).itemsize
    est = (2 * C * b_pad * G * st             # gate slab, double buffered
           + 2 * C * b_pad * Hp * ot          # output slab, double buffered
           + 2 * 2 * Hp * G * 4               # recurrent weights (worst case 2 buffers)
           + 2 * b_pad * Hp * 4)              # h/c scratch

    def time_map(d, t):
        # forward (d=0): chunk t ; backward (d=1): chunk nchunks-1-t (walked in reverse)
        return (d, t + d * (nchunks - 1 - 2 * t), 0, 0)

    return pl.pallas_call(
        _bilstm_rec_kernel,
        out_shape=jax.ShapeDtypeStruct((2, T_pad, b_pad, Hp), out_dtype),
        grid=(2, nchunks),
        in_specs=[
            pl.BlockSpec((None, C, b_pad, G), time_map),
            _const_spec((2, Hp, G), lambda d, t: (0, 0, 0)),
        ],
        out_specs=pl.BlockSpec((None, C, b_pad, Hp), time_map),
        scratch_shapes=[pltpu.VMEM((b_pad, Hp), jnp.float32),
                        pltpu.VMEM((b_pad, Hp), jnp.float32)],
        compiler_params=pltpu.CompilerParams(
            # direction axis is parallel -> split across the two TensorCores on v7x;
            # the time axis carries sequential h/c state and stays "arbitrary".
            dimension_semantics=("parallel", "arbitrary"),
            vmem_limit_bytes=_vmem_limit(est)),
    )(gx, whh)


# ----------------------------------------------------------------------------
# Kernel 3: fused embedding projection (no concat): fwd@W_top + bwd@W_bot + bias.
# ----------------------------------------------------------------------------
def _out_proj_kernel(f_ref, b_ref, wt_ref, wb_ref, bias_ref, o_ref):
    acc = jnp.dot(f_ref[...].astype(jnp.float32), wt_ref[...],
                  preferred_element_type=jnp.float32)
    acc = acc + jnp.dot(b_ref[...].astype(jnp.float32), wb_ref[...],
                        preferred_element_type=jnp.float32)
    o_ref[...] = (acc + bias_ref[...]).astype(o_ref.dtype)


def output_projection(fwd2d, bwd2d, w_top, w_bot, bias):
    M, Hp = fwd2d.shape
    Npad = w_top.shape[1]
    tm = _pick_tm(M)
    st = jnp.dtype(fwd2d.dtype).itemsize
    est = (2 * 2 * tm * Hp * st + 2 * 2 * Hp * Npad * 4 + 2 * Npad * 4
           + 2 * tm * Npad * 4)
    return pl.pallas_call(
        _out_proj_kernel,
        out_shape=jax.ShapeDtypeStruct((M, Npad), jnp.float32),
        grid=(M // tm,),
        in_specs=[
            pl.BlockSpec((tm, Hp), lambda i: (i, 0)),
            pl.BlockSpec((tm, Hp), lambda i: (i, 0)),
            _const_spec((Hp, Npad), lambda i: (0, 0)),
            _const_spec((Hp, Npad), lambda i: (0, 0)),
            _const_spec((1, Npad), lambda i: (0, 0)),
        ],
        out_specs=pl.BlockSpec((tm, Npad), lambda i: (i, 0)),
        compiler_params=pltpu.CompilerParams(
            dimension_semantics=("parallel",),
            vmem_limit_bytes=_vmem_limit(est)),
    )(fwd2d, bwd2d, w_top, w_bot, bias)


# ----------------------------------------------------------------------------
# One-time weight preparation (all padding / stacking off the per-call path).
# Hidden dim is padded per-gate to a multiple of 128; padded lanes receive zero
# weights & biases so their gate pre-activations are exactly 0 and their h stays 0.
# ----------------------------------------------------------------------------
def prepare_params(params):
    H = params["whh_f"].shape[0]
    nIn = params["wih_f"].shape[0]
    nOut = params["w_emb"].shape[1]
    Hp = _round_up(H, 128)
    Npad = _round_up(nOut, 128)

    def pad_gate_cols(w):                      # (..., 4H) -> (..., 4Hp), per-gate
        lead = w.shape[:-1]
        w = w.reshape(lead + (4, H))
        w = jnp.pad(w, [(0, 0)] * len(lead) + [(0, 0), (0, Hp - H)])
        return w.reshape(lead + (4 * Hp,))

    wih_cat = jnp.concatenate([pad_gate_cols(params["wih_f"]),
                               pad_gate_cols(params["wih_b"])], axis=1)    # (nIn, 8Hp)
    bias_cat = jnp.concatenate([pad_gate_cols(params["bias_f"]),
                                pad_gate_cols(params["bias_b"])], axis=1)  # (1, 8Hp)

    def pad_whh(w):                            # (H, 4H) -> (Hp, 4Hp)
        return jnp.pad(pad_gate_cols(w), ((0, Hp - H), (0, 0)))

    whh = jnp.stack([pad_whh(params["whh_f"]), pad_whh(params["whh_b"])])  # (2, Hp, 4Hp)

    w_top = jnp.zeros((Hp, Npad), jnp.float32).at[:H, :nOut].set(params["w_emb"][:H])
    w_bot = jnp.zeros((Hp, Npad), jnp.float32).at[:H, :nOut].set(params["w_emb"][H:])
    b_emb = jnp.zeros((1, Npad), jnp.float32).at[:, :nOut].set(params["b_emb"])

    return dict(H=H, Hp=Hp, nIn=nIn, nOut=nOut, Npad=Npad,
                wih_cat=wih_cat, bias_cat=bias_cat, whh=whh,
                w_top=w_top, w_bot=w_bot, b_emb=b_emb)


def _pick_chunk(T, b_pad, Hp, store_bytes, *, max_chunk=32, budget_bytes=40 * _MIB):
    """Largest time chunk whose kernel-2 VMEM footprint fits the budget (the budget
    is chosen to be safe on v7x's 64 MiB VMEM; v5e/v6e have 128 MiB)."""
    G = 4 * Hp
    best = 1
    for c in range(1, min(max_chunk, T) + 1):
        need = (2 * c * b_pad * G * store_bytes
                + 2 * c * b_pad * Hp * store_bytes
                + 2 * 2 * Hp * G * 4
                + 2 * b_pad * Hp * 4)
        if need <= budget_bytes:
            best = c
    return best


# ----------------------------------------------------------------------------
# Full module forward (plain-JAX glue around the three kernels).
# ----------------------------------------------------------------------------
def bidirectional_lstm_module(x, prep, *, store_dtype=jnp.float32, chunk=None):
    """Matches:  recurrent, _ = nn.LSTM(nIn, nHidden, bidirectional=True)(x)
                 out = nn.Linear(2*nHidden, nOut)(recurrent.view(T*b, -1)).view(T, b, -1)

    `store_dtype` controls HBM storage of the precomputed gate slabs and recurrence
    outputs (use bf16 on bandwidth-limited v5e/v6e; state/compute stays f32)."""
    T, b, nIn = x.shape
    Hp, Npad, nOut = prep["Hp"], prep["Npad"], prep["nOut"]
    G = 4 * Hp

    # batch padded to a sublane multiple; padded rows are independent, sliced away.
    b_pad = _round_up(b, 8)
    if b_pad != b:
        x = jnp.pad(x, ((0, 0), (0, b_pad - b), (0, 0)))
    x2d = x.reshape(T * b_pad, nIn)

    # K1: hoisted input projection (one fused matmul for both directions)
    gx = input_projection(x2d, prep["wih_cat"], prep["bias_cat"],
                          out_dtype=store_dtype)                     # (2, T*b_pad, 4Hp)
    gx = gx.reshape(2, T, b_pad, G)

    # Time chunking: pad T up to a multiple of the chunk.  The forward stream is
    # padded at the END and the backward stream at the FRONT, so padded steps run
    # after all real steps of their chain and never corrupt carried h/c.
    store_bytes = jnp.dtype(store_dtype).itemsize
    if chunk is None:
        chunk = _pick_chunk(T, b_pad, Hp, store_bytes)
    C = max(1, min(chunk, T))
    T_pad = _round_up(T, C)
    pad_t = T_pad - T
    if pad_t:
        gx = jnp.stack([jnp.pad(gx[0], ((0, pad_t), (0, 0), (0, 0))),
                        jnp.pad(gx[1], ((pad_t, 0), (0, 0), (0, 0)))])

    # K2: bidirectional recurrence (direction axis parallel, time axis sequential)
    outs = bilstm_recurrence(gx, prep["whh"], chunk=C, out_dtype=store_dtype)
    fwd2d = outs[0, :T].reshape(T * b_pad, Hp)
    bwd2d = outs[1, pad_t:pad_t + T].reshape(T * b_pad, Hp)

    # K3: fused output projection (no concat round-trip)
    out2d = output_projection(fwd2d, bwd2d,
                              prep["w_top"], prep["w_bot"], prep["b_emb"])
    return out2d.reshape(T, b_pad, Npad)[:, :b, :nOut]


# ----------------------------------------------------------------------------
# Pure-JAX reference (lax.scan LSTM) for the correctness check.
# ----------------------------------------------------------------------------
def _lstm_dir_ref(x, wih, whh, bias, H):
    bsz = x.shape[1]

    def step(carry, x_t):
        h, c = carry
        gates = x_t @ wih + h @ whh + bias
        i = jax.nn.sigmoid(gates[:, 0 * H:1 * H])
        f = jax.nn.sigmoid(gates[:, 1 * H:2 * H])
        g = jnp.tanh(gates[:, 2 * H:3 * H])
        o = jax.nn.sigmoid(gates[:, 3 * H:4 * H])
        c = f * c + i * g
        h = o * jnp.tanh(c)
        return (h, c), h

    init = (jnp.zeros((bsz, H), jnp.float32), jnp.zeros((bsz, H), jnp.float32))
    _, hs = jax.lax.scan(step, init, x)
    return hs


def reference(x, params):
    with jax.default_matmul_precision("highest"):
        H = params["whh_f"].shape[0]
        fwd = _lstm_dir_ref(x, params["wih_f"], params["whh_f"], params["bias_f"], H)
        bwd = _lstm_dir_ref(x[::-1], params["wih_b"], params["whh_b"],
                            params["bias_b"], H)[::-1]
        rec = jnp.concatenate([fwd, bwd], axis=-1)
        T, b, H2 = rec.shape
        out = rec.reshape(T * b, H2) @ params["w_emb"] + params["b_emb"]
        return out.reshape(T, b, -1)


# ----------------------------------------------------------------------------
# Deterministic parameter init (shapes mirror nn.LSTM / nn.Linear); weights stored
# transposed for x @ W layout, b_ih + b_hh folded.
# ----------------------------------------------------------------------------
def init_params(key, nIn, nHidden, nOut):
    ks = jax.random.split(key, 10)
    s = 1.0 / jnp.sqrt(nHidden)

    def u(k, shape):
        return jax.random.uniform(k, shape, jnp.float32, -s, s)

    return dict(
        wih_f=u(ks[0], (nIn, 4 * nHidden)),
        whh_f=u(ks[1], (nHidden, 4 * nHidden)),
        bias_f=(u(ks[2], (1, 4 * nHidden)) + u(ks[3], (1, 4 * nHidden))),
        wih_b=u(ks[4], (nIn, 4 * nHidden)),
        whh_b=u(ks[5], (nHidden, 4 * nHidden)),
        bias_b=(u(ks[6], (1, 4 * nHidden)) + u(ks[7], (1, 4 * nHidden))),
        w_emb=u(ks[8], (2 * nHidden, nOut)),
        b_emb=u(ks[9], (1, nOut)),
    )


if __name__ == "__main__":
    T, b, nIn, nHidden, nOut = 8, 2, 16, 32, 8

    key = jax.random.PRNGKey(0)
    kx, kp, kx2 = jax.random.split(key, 3)
    x = jax.random.normal(kx, (T, b, nIn), dtype=jnp.float32)
    params = init_params(kp, nIn, nHidden, nOut)
    prep = prepare_params(params)

    # f32 storage path (tolerance accommodates MXU pass structure across generations)
    out = jax.block_until_ready(bidirectional_lstm_module(x, prep))
    ref = reference(x, params)
    assert out.shape == (T, b, nOut), out.shape
    assert jnp.allclose(out, ref, atol=5e-3, rtol=5e-3), float(
        jnp.max(jnp.abs(out - ref)))

    # bf16 gate/output storage + T not divisible by chunk (exercises time padding
    # and batch padding); state/compute stays f32, so only storage rounding remains.
    T2, b2 = 10, 3
    x2 = jax.random.normal(kx2, (T2, b2, nIn), dtype=jnp.float32)
    out2 = jax.block_until_ready(
        bidirectional_lstm_module(x2, prep, store_dtype=jnp.bfloat16, chunk=4))
    ref2 = reference(x2, params)
    assert out2.shape == (T2, b2, nOut), out2.shape
    assert jnp.allclose(out2, ref2, atol=5e-2, rtol=5e-2), float(
        jnp.max(jnp.abs(out2 - ref2)))

    print("KERNEL_OK")
</pallas_src>

<mosaic_0001>
module attributes {stable_mosaic.version = 11 : i64} {
  func.func @k(%arg0: i32, %arg1: memref<8x128xf32, #tpu.memory_space<vmem>>, %arg2: memref<8x128xf32, #tpu.memory_space<vmem>>) attributes {dimension_semantics = [#tpu.dimension_semantics<arbitrary>], iteration_bounds = array<i64: 1>, scalar_prefetch = 0 : i64, scratch_operands = 0 : i64, tpu.core_type = #tpu.core_type<tc>, window_params = [{pipeline_mode = #tpu.pipeline_mode<synchronous>, transform_indices = @transform_0, window_bounds = array<i64: 8, 128>}, {pipeline_mode = #tpu.pipeline_mode<synchronous>, transform_indices = @transform_1, window_bounds = array<i64: 8, 128>}]} {
    %c0 = arith.constant 0 : index
    %c0_0 = arith.constant 0 : index
    %0 = vector.load %arg1[%c0, %c0_0] : memref<8x128xf32, #tpu.memory_space<vmem>>, vector<8x128xf32>
    %cst = arith.constant 2.000000e+00 : f32
    %1 = vector.broadcast %cst : f32 to vector<8x128xf32>
    %2 = arith.mulf %0, %1 : vector<8x128xf32>
    %c0_1 = arith.constant 0 : index
    %c0_2 = arith.constant 0 : index
    %3 = vector.load %arg2[%c0_1, %c0_2] : memref<8x128xf32, #tpu.memory_space<vmem>>, vector<8x128xf32>
    tpu.vector_store %arg2[%c0_1, %c0_2], %2 {strides = array<i32>} : memref<8x128xf32, #tpu.memory_space<vmem>>, vector<8x128xf32>,
    return
  }
  func.func @transform_0(%arg0: i32) -> (i32, i32) {
    %c0_i32 = arith.constant 0 : i32
    %c0_i32_0 = arith.constant 0 : i32
    %c0_i32_1 = arith.constant 0 : i32
    return %c0_i32, %c0_i32_0 : i32, i32
  }
  func.func @transform_1(%arg0: i32) -> (i32, i32) {
    %c0_i32 = arith.constant 0 : i32
    %c0_i32_0 = arith.constant 0 : i32
    %c0_i32_1 = arith.constant 0 : i32
    return %c0_i32, %c0_i32_0 : i32, i32
  }
}

module attributes {stable_mosaic.version = 11 : i64} {
  func.func @_input_proj_kernel(%arg0: i32, %arg1: memref<64x16xf32, #tpu.memory_space<vmem>>, %arg2: memref<16x1024xf32, #tpu.memory_space<vmem>>, %arg3: memref<1x1024xf32, #tpu.memory_space<vmem>>, %arg4: memref<2x64x512xf32, #tpu.memory_space<vmem>>) attributes {dimension_semantics = [#tpu.dimension_semantics<parallel>], iteration_bounds = array<i64: 1>, scalar_prefetch = 0 : i64, scratch_operands = 0 : i64, tpu.core_type = #tpu.core_type<tc>, window_params = [{transform_indices = @transform_0, window_bounds = array<i64: 64, 16>}, {pipeline_mode = #tpu.pipeline_mode<synchronous>, transform_indices = @transform_1, window_bounds = array<i64: 16, 1024>}, {pipeline_mode = #tpu.pipeline_mode<synchronous>, transform_indices = @transform_2, window_bounds = array<i64: 1, 1024>}, {transform_indices = @transform_3, window_bounds = array<i64: 2, 64, 512>}]} {
    %c0 = arith.constant 0 : index
    %c0_0 = arith.constant 0 : index
    %0 = vector.load %arg1[%c0, %c0_0] : memref<64x16xf32, #tpu.memory_space<vmem>>, vector<64x16xf32>
    %c0_1 = arith.constant 0 : index
    %c0_2 = arith.constant 0 : index
    %1 = vector.load %arg2[%c0_1, %c0_2] : memref<16x1024xf32, #tpu.memory_space<vmem>>, vector<16x1024xf32>
    %cst = arith.constant dense<0.000000e+00> : vector<64x1024xf32>
    %2 = tpu.matmul %0, %1, %cst {dimension_numbers = #tpu.dot_dimension_numbers<[1], [0], [0], [1], [0, 0, 1, 1], [], []>} : vector<64x16xf32>, vector<16x1024xf32>, vector<64x1024xf32> -> vector<64x1024xf32>
    %c0_3 = arith.constant 0 : index
    %c0_4 = arith.constant 0 : index
    %3 = vector.load %arg3[%c0_3, %c0_4] : memref<1x1024xf32, #tpu.memory_space<vmem>>, vector<1x1024xf32>
    %4 = vector.broadcast %3 : vector<1x1024xf32> to vector<64x1024xf32>
    %5 = arith.addf %2, %4 : vector<64x1024xf32>
    %6 = vector.extract_strided_slice %5 {offsets = [0, 0], sizes = [64, 512], strides = [1, 1]} : vector<64x1024xf32> to vector<64x512xf32>
    %c0_5 = arith.constant 0 : index
    %c0_6 = arith.constant 0 : index
    %c0_7 = arith.constant 0 : index
    %7 = vector.load %arg4[%c0_5, %c0_6, %c0_7] : memref<2x64x512xf32, #tpu.memory_space<vmem>>, vector<1x64x512xf32>
    %8 = vector.shape_cast %7 : vector<1x64x512xf32> to vector<64x512xf32>
    %9 = vector.shape_cast %6 : vector<64x512xf32> to vector<1x64x512xf32>
    tpu.vector_store %arg4[%c0_5, %c0_6, %c0_7], %9 {strides = array<i32>} : memref<2x64x512xf32, #tpu.memory_space<vmem>>, vector<1x64x512xf32>,
    %10 = vector.extract_strided_slice %5 {offsets = [0, 512], sizes = [64, 512], strides = [1, 1]} : vector<64x1024xf32> to vector<64x512xf32>
    %c1 = arith.constant 1 : index
    %c0_8 = arith.constant 0 : index
    %c0_9 = arith.constant 0 : index
    %11 = vector.load %arg4[%c1, %c0_8, %c0_9] : memref<2x64x512xf32, #tpu.memory_space<vmem>>, vector<1x64x512xf32>
    %12 = vector.shape_cast %11 : vector<1x64x512xf32> to vector<64x512xf32>
    %13 = vector.shape_cast %10 : vector<64x512xf32> to vector<1x64x512xf32>
    tpu.vector_store %arg4[%c1, %c0_8, %c0_9], %13 {strides = array<i32>} : memref<2x64x512xf32, #tpu.memory_space<vmem>>, vector<1x64x512xf32>,
    return
  }
  func.func @transform_0(%arg0: i32) -> (i32, i32) {
    %c0_i32 = arith.constant 0 : i32
    %c0_i32_0 = arith.constant 0 : i32
    return %arg0, %c0_i32 : i32, i32
  }
  func.func @transform_1(%arg0: i32) -> (i32, i32) {
    %c0_i32 = arith.constant 0 : i32
    %c0_i32_0 = arith.constant 0 : i32
    %c0_i32_1 = arith.constant 0 : i32
    return %c0_i32, %c0_i32_0 : i32, i32
  }
  func.func @transform_2(%arg0: i32) -> (i32, i32) {
    %c0_i32 = arith.constant 0 : i32
    %c0_i32_0 = arith.constant 0 : i32
    %c0_i32_1 = arith.constant 0 : i32
    return %c0_i32, %c0_i32_0 : i32, i32
  }
  func.func @transform_3(%arg0: i32) -> (i32, i32, i32) {
    %c0_i32 = arith.constant 0 : i32
    %c0_i32_0 = arith.constant 0 : i32
    %c0_i32_1 = arith.constant 0 : i32
    return %c0_i32, %arg0, %c0_i32_0 : i32, i32, i32
  }
}

</mosaic_0001>

<llo_original>
// kernel: tpu_custom_call.1
$region0: #{tpu_custom_call.1}
  #allocation0 [shape = 'u32[]', space=smem, size = 0x4, offset = 0x4, fixed_abs, tag = 'smem constant byte address 0x4 - core index']
  #allocation1 [shape = 'u32[144,128]{1,0:T(1,128)}', space=vmem, size = 0x12000, scoped, tag = 'internal scratch']
  %s0 = inlined_call_operand.hbm [shape: f32[8,128], index: 0, kind: input, shape index: {}]
  %s1 = inlined_call_operand.hbm [shape: f32[8,128], index: 1, kind: output, shape index: {}]
  %s2 = sld [smem:[#allocation0]]
  $region18: #{tpu_custom_call.1} parent=0
    _
  %s4 = ssub.s32 1, %s2
  %s5 = scalar_select 0, %s4, %s2
  $region1: #{tpu_custom_call.1} parent=0
    #allocation2 [shape = 'u8[4096]{0}', space=vmem, size = 0x1000, scoped, tag = 'input window, operand 0, single buffered']
    #allocation3 [shape = 's32[1]{0}', space=sflag, size = 0x4, scoped, tag = 'scoped memory for tpu_custom_call.1']
    #allocation4 [shape = 's32[1]{0}', space=sflag, size = 0x4, scoped, tag = 'scoped memory for tpu_custom_call.1']
    #allocation5 [shape = 'u8[4096]{0}', space=vmem, size = 0x1000, scoped, tag = 'output window, operand 0, single buffered']
    %6 = vsyncpa [#allocation3], 0
    %7 = vsyncpa [#allocation4], 0
    // Predicated region
    $region2: #{tpu_custom_call.1} parent=1 // pred_check
      _
    $region3: #{tpu_custom_call.1} parent=1 // pred_check_branch
      %9 = sbr.rel (0) target = $region5
    $region4: #{tpu_custom_call.1} parent=1 // pred_region
      %s11 = ssub.s32 128, 128
      %12 = vsyncadd [#allocation3], %s11
      %s14 = sshll.u32 [#allocation2], 4
      %s15 = int_to_ptr.vmem [resolvable:$true] %s14
      %17 = dma.hbm_to_vmem [thread:$0]  %s0, 128, %s15, [#allocation3]
    $region5: #{tpu_custom_call.1} parent=1 // pred_fallthru
      _
    // Predicated region
    $region6: #{tpu_custom_call.1} parent=1 // pred_check
      _
    $region7: #{tpu_custom_call.1} parent=1 // pred_check_branch
      %19 = sbr.rel (0) target = $region9
    $region8: #{tpu_custom_call.1} parent=1 // pred_region
      %20 = dma.done [#allocation3], 128
    $region9: #{tpu_custom_call.1} parent=1 // pred_fallthru
      _
    %v21 = vld [vmem:[#allocation2] sm:$0xff]
    %v22 = vmul.f32 %v21, 2.0
    %23 = vst [vmem:[#allocation5] sm:$0xff] %v22
    // Predicated region
    $region10: #{tpu_custom_call.1} parent=1 // pred_check
      _
    $region11: #{tpu_custom_call.1} parent=1 // pred_check_branch
      %25 = sbr.rel (0) target = $region13
    $region12: #{tpu_custom_call.1} parent=1 // pred_region
      %s27 = ssub.s32 128, 128
      %28 = vsyncadd [#allocation4], %s27
      %s30 = sshll.u32 [#allocation5], 4
      %s31 = int_to_ptr.vmem [resolvable:$true] %s30
      %33 = dma.vmem_to_hbm [thread:$0]  %s31, 128, %s1, [#allocation4]
    $region13: #{tpu_custom_call.1} parent=1 // pred_fallthru
      _
    // Predicated region
    $region14: #{tpu_custom_call.1} parent=1 // pred_check
      _
    $region15: #{tpu_custom_call.1} parent=1 // pred_check_branch
      %35 = sbr.rel (0) target = $region17
    $region16: #{tpu_custom_call.1} parent=1 // pred_region
      %36 = dma.done [#allocation4], 128
    $region17: #{tpu_custom_call.1} parent=1 // pred_fallthru
      _
    %37 = vsyncpa [#allocation3], 1
    %38 = vsyncpa [#allocation4], 1

// kernel: tpu_custom_call.1
$region0: #{tpu_custom_call.1}
  #allocation0 [shape = 'u32[]', space=smem, size = 0x4, offset = 0x4, fixed_abs, tag = 'smem constant byte address 0x4 - core index']
  #allocation1 [shape = 'u32[144,128]{1,0:T(1,128)}', space=vmem, size = 0x12000, scoped, tag = 'internal scratch']
  %s0 = inlined_call_operand.vmem [shape: f32[64,16], index: 0, kind: input, shape index: {}]
  %s1 = inlined_call_operand.hbm [shape: f32[16,1024], index: 1, kind: input, shape index: {}]
  %s2 = inlined_call_operand.vmem [shape: f32[1,1024], index: 2, kind: input, shape index: {}]
  %s3 = inlined_call_operand.hbm [shape: f32[2,64,512], index: 3, kind: output, shape index: {}]
  %s4 = sld [smem:[#allocation0]]
  $region26: #{tpu_custom_call.1} parent=0
    _
  %s6 = ssub.s32 1, %s4
  %s7 = scalar_select 0, %s6, %s4
  $region1: #{tpu_custom_call.1} parent=0
    #allocation2 [shape = 'u8[65536]{0}', space=vmem, size = 0x10000, scoped, tag = 'input window, operand 1, single buffered']
    #allocation3 [shape = 's32[1]{0}', space=sflag, size = 0x4, scoped, tag = 'scoped memory for tpu_custom_call.1']
    #allocation4 [shape = 's32[1]{0}', space=sflag, size = 0x4, scoped, tag = 'scoped memory for tpu_custom_call.1']
    #allocation5 [shape = 'u8[262144]{0}', space=vmem, size = 0x40000, scoped, tag = 'output window, operand 0, single buffered']
    %8 = vsyncpa [#allocation3], 0
    %9 = vsyncpa [#allocation4], 0
    // Predicated region
    $region2: #{tpu_custom_call.1} parent=1 // pred_check
      _
    $region3: #{tpu_custom_call.1} parent=1 // pred_check_branch
      %11 = sbr.rel (0) target = $region5
    $region4: #{tpu_custom_call.1} parent=1 // pred_region
      _
    $region5: #{tpu_custom_call.1} parent=1 // pred_fallthru
      _
    // Predicated region
    $region6: #{tpu_custom_call.1} parent=1 // pred_check
      _
    $region7: #{tpu_custom_call.1} parent=1 // pred_check_branch
      %13 = sbr.rel (0) target = $region9
    $region8: #{tpu_custom_call.1} parent=1 // pred_region
      %s15 = ssub.s32 2048, 2048
      %16 = vsyncadd [#allocation3], %s15
      %s17 = sshll.u32 [#allocation2], 4
      %s18 = int_to_ptr.vmem [resolvable:$true] %s17
      %23 = dma.hbm_to_vmem [thread:$0]  %s1, 2048, %s18, [#allocation3], 1024, 1024, 64
    $region9: #{tpu_custom_call.1} parent=1 // pred_fallthru
      _
    // Predicated region
    $region10: #{tpu_custom_call.1} parent=1 // pred_check
      _
    $region11: #{tpu_custom_call.1} parent=1 // pred_check_branch
      %25 = sbr.rel (0) target = $region13
    $region12: #{tpu_custom_call.1} parent=1 // pred_region
      _
    $region13: #{tpu_custom_call.1} parent=1 // pred_fallthru
      _
    // Predicated region
    $region14: #{tpu_custom_call.1} parent=1 // pred_check
      _
    $region15: #{tpu_custom_call.1} parent=1 // pred_check_branch
      %27 = sbr.rel (0) target = $region17
    $region16: #{tpu_custom_call.1} parent=1 // pred_region
      %28 = dma.done [#allocation3], 2048
    $region17: #{tpu_custom_call.1} parent=1 // pred_fallthru
      _
    %v29 = vld [vmem:[%s0] sm:$0xff]
    %v30 = vld [vmem:[%s0 + $0x8] sm:$0xff]
    %v31 = vld [vmem:[%s0 + $0x10] sm:$0xff]
    %v32 = vld [vmem:[%s0 + $0x18] sm:$0xff]
    %v33 = vld [vmem:[%s0 + $0x20] sm:$0xff]
    %v34 = vld [vmem:[%s0 + $0x28] sm:$0xff]
    %v35 = vld [vmem:[%s0 + $0x30] sm:$0xff]
    %v36 = vld [vmem:[%s0 + $0x38] sm:$0xff]
    %v37 = vld [vmem:[#allocation2] sm:$0xff]
    %v38 = vld [vmem:[#allocation2 + $0x8] sm:$0xff]
    %v39 = vld [vmem:[#allocation2 + $0x10] sm:$0xff]
    %v40 = vld [vmem:[#allocation2 + $0x18] sm:$0xff]
    %v41 = vld [vmem:[#allocation2 + $0x20] sm:$0xff]
    %v42 = vld [vmem:[#allocation2 + $0x28] sm:$0xff]
    %v43 = vld [vmem:[#allocation2 + $0x30] sm:$0xff]
    %v44 = vld [vmem:[#allocation2 + $0x38] sm:$0xff]
    %v45 = vld [vmem:[#allocation2 + $0x40] sm:$0xff]
    %v46 = vld [vmem:[#allocation2 + $0x48] sm:$0xff]
    %v47 = vld [vmem:[#allocation2 + $0x50] sm:$0xff]
    %v48 = vld [vmem:[#allocation2 + $0x58] sm:$0xff]
    %v49 = vld [vmem:[#allocation2 + $0x60] sm:$0xff]
    %v50 = vld [vmem:[#allocation2 + $0x68] sm:$0xff]
    %v51 = vld [vmem:[#allocation2 + $0x70] sm:$0xff]
    %v52 = vld [vmem:[#allocation2 + $0x78] sm:$0xff]
    %v53 = vld [vmem:[%s2] sm:$0xff]
    %v55 = vlaneseq
    %v56 = vshrl.u32 %v55, 7
    %v57 = vsub.s32 0, %v56
    %v58 = vrot.slane %v53, %v57
    %v59 = vlaneseq
    %v60 = vshrl.u32 %v59, 7
    %v61 = vsub.s32 1, %v60
    %v62 = vrot.slane %v53, %v61
    %v63 = vlaneseq
    %v64 = vshrl.u32 %v63, 7
    %v65 = vsub.s32 2, %v64
    %v66 = vrot.slane %v53, %v65
    %v67 = vlaneseq
    %v68 = vshrl.u32 %v67, 7
    %v69 = vsub.s32 3, %v68
    %v70 = vrot.slane %v53, %v69
    %v71 = vlaneseq
    %v72 = vshrl.u32 %v71, 7
    %v73 = vsub.s32 4, %v72
    %v74 = vrot.slane %v53, %v73
    %v75 = vlaneseq
    %v76 = vshrl.u32 %v75, 7
    %v77 = vsub.s32 5, %v76
    %v78 = vrot.slane %v53, %v77
    %v79 = vlaneseq
    %v80 = vshrl.u32 %v79, 7
    %v81 = vsub.s32 6, %v80
    %v82 = vrot.slane %v53, %v81
    %v83 = vlaneseq
    %v84 = vshrl.u32 %v83, 7
    %v85 = vsub.s32 7, %v84
    %v86 = vrot.slane %v53, %v85
    %vm95 = vcmask 130048
    %v97 = vsel %vm95, %v29, 0
    %v100 = vsel %vm95, %v30, 0
    %v103 = vsel %vm95, %v31, 0
    %v106 = vsel %vm95, %v32, 0
    %v109 = vsel %vm95, %v33, 0
    %v112 = vsel %vm95, %v34, 0
    %v115 = vsel %vm95, %v35, 0
    %v118 = vsel %vm95, %v36, 0
    %120 = vmatprep.subr.mxu0 0.0
    %121 = vmatpush1.msra.mxu0 0.0
    %122 = vmatprep.subr.mxu0 0.0
    %123 = vmatpush1.msra.mxu0 0.0
    %124 = vmatprep.subr.mxu0 0.0
    %125 = vmatpush1.msra.mxu0 0.0
    %126 = vmatprep.subr.mxu0 0.0
    %127 = vmatpush1.msra.mxu0 0.0
    %128 = vmatprep.subr.mxu0 0.0
    %129 = vmatpush1.msra.mxu0 0.0
    %130 = vmatprep.subr.mxu0 0.0
    %131 = vmatpush1.msra.mxu0 0.0
    %132 = vmatprep.subr.mxu0 0.0
    %133 = vmatpush1.msra.mxu0 0.0
    %134 = vmatprep.subr.mxu0 0.0
    %135 = vmatpush1.msra.mxu0 0.0
    %136 = vmatprep.subr.mxu0 0.0
    %137 = vmatpush1.msra.mxu0 0.0
    %138 = vmatprep.subr.mxu0 0.0
    %139 = vmatpush1.msra.mxu0 0.0
    %140 = vmatprep.subr.mxu0 0.0
    %141 = vmatpush1.msra.mxu0 0.0
    %142 = vmatprep.subr.mxu0 0.0
    %143 = vmatpush1.msra.mxu0 0.0
    %144 = vmatprep.subr.mxu0 0.0
    %145 = vmatpush1.msra.mxu0 0.0
    %146 = vmatprep.subr.mxu0 0.0
    %147 = vmatpush1.msra.mxu0 0.0
    %148 = vmatprep.subr.mxu0 %v46
    %149 = vmatpush1.msra.mxu0 %v45
    %150 = vmatprep.subr.mxu0 %v38
    %151 = vmatpush1.msra.mxu0 %v37
    %152 = vmatprep.subr.mxu0 0.0
    %153 = vmatpush2.msra.mxu0 0.0
    %154 = vmatprep.subr.mxu0 0.0
    %155 = vmatpush2.msra.mxu0 0.0
    %156 = vmatprep.subr.mxu0 0.0
    %157 = vmatpush2.msra.mxu0 0.0
    %158 = vmatprep.subr.mxu0 0.0
    %159 = vmatpush2.msra.mxu0 0.0
    %160 = vmatprep.subr.mxu0 0.0
    %161 = vmatpush2.msra.mxu0 0.0
    %162 = vmatprep.subr.mxu0 0.0
    %163 = vmatpush2.msra.mxu0 0.0
    %164 = vmatprep.subr.mxu0 0.0
    %165 = vmatpush2.msra.mxu0 0.0
    %166 = vmatprep.subr.mxu0 0.0
    %167 = vmatpush2.msra.mxu0 0.0
    %168 = vmatprep.subr.mxu0 0.0
    %169 = vmatpush2.msra.mxu0 0.0
    %170 = vmatprep.subr.mxu0 0.0
    %171 = vmatpush2.msra.mxu0 0.0
    %172 = vmatprep.subr.mxu0 0.0
    %173 = vmatpush2.msra.mxu0 0.0
    %174 = vmatprep.subr.mxu0 0.0
    %175 = vmatpush2.msra.mxu0 0.0
    %176 = vmatprep.subr.mxu0 0.0
    %177 = vmatpush2.msra.mxu0 0.0
    %178 = vmatprep.subr.mxu0 0.0
    %179 = vmatpush2.msra.mxu0 0.0
    %180 = vmatprep.subr.mxu0 0.0
    %181 = vmatpush2.msra.mxu0 0.0
    %182 = vmatprep.subr.mxu0 0.0
    %183 = vmatpush2.msra.mxu0 0.0
    %184 = vmatprep.mubr.f32.mxu0 0.0
    %185 = vmatmul.mubr.f32.gmra.mxu0 %v97
    %v186 = vpop.f32.mrf.mxu0
    %v187 = vadd.f32 %v58, %v186
    %v188 = vpop.f32.mrf.mxu0
    %v189 = vadd.f32 %v62, %v188
    %190 = vmatprep.mubr.f32.mxu0 0.0
    %191 = vmatmul.mubr.f32.gmra.mxu0 %v100
    %v192 = vpop.f32.mrf.mxu0
    %v193 = vadd.f32 %v58, %v192
    %v194 = vpop.f32.mrf.mxu0
    %v195 = vadd.f32 %v62, %v194
    %196 = vmatprep.mubr.f32.mxu0 0.0
    %197 = vmatmul.mubr.f32.gmra.mxu0 %v103
    %v198 = vpop.f32.mrf.mxu0
    %v199 = vadd.f32 %v58, %v198
    %v200 = vpop.f32.mrf.mxu0
    %v201 = vadd.f32 %v62, %v200
    %202 = vmatprep.mubr.f32.mxu0 0.0
    %203 = vmatmul.mubr.f32.gmra.mxu0 %v106
    %v204 = vpop.f32.mrf.mxu0
    %v205 = vadd.f32 %v58, %v204
    %v206 = vpop.f32.mrf.mxu0
    %v207 = vadd.f32 %v62, %v206
    %208 = vmatprep.mubr.f32.mxu0 0.0
    %209 = vmatmul.mubr.f32.gmra.mxu0 %v109
    %v210 = vpop.f32.mrf.mxu0
    %v211 = vadd.f32 %v58, %v210
    %v212 = vpop.f32.mrf.mxu0
    %v213 = vadd.f32 %v62, %v212
    %214 = vmatprep.mubr.f32.mxu0 0.0
    %215 = vmatmul.mubr.f32.gmra.mxu0 %v112
    %v216 = vpop.f32.mrf.mxu0
    %v217 = vadd.f32 %v58, %v216
    %v218 = vpop.f32.mrf.mxu0
    %v219 = vadd.f32 %v62, %v218
    %220 = vmatprep.mubr.f32.mxu0 0.0
    %221 = vmatmul.mubr.f32.gmra.mxu0 %v115
    %v222 = vpop.f32.mrf.mxu0
    %v223 = vadd.f32 %v58, %v222
    %v224 = vpop.f32.mrf.mxu0
    %v225 = vadd.f32 %v62, %v224
    %226 = vmatprep.mubr.f32.mxu0 0.0
    %227 = vmatmul.mubr.f32.gmra.mxu0 %v118
    %v228 = vpop.f32.mrf.mxu0
    %v229 = vadd.f32 %v58, %v228
    %v230 = vpop.f32.mrf.mxu0
    %v231 = vadd.f32 %v62, %v230
    %232 = vdwg.mxu0
    %233 = vmatprep.subr.mxu0 0.0
    %234 = vmatpush1.msra.mxu0 0.0
    %235 = vmatprep.subr.mxu0 0.0
    %236 = vmatpush1.msra.mxu0 0.0
    %237 = vmatprep.subr.mxu0 0.0
    %238 = vmatpush1.msra.mxu0 0.0
    %239 = vmatprep.subr.mxu0 0.0
    %240 = vmatpush1.msra.mxu0 0.0
    %241 = vmatprep.subr.mxu0 0.0
    %242 = vmatpush1.msra.mxu0 0.0
    %243 = vmatprep.subr.mxu0 0.0
    %244 = vmatpush1.msra.mxu0 0.0
    %245 = vmatprep.subr.mxu0 0.0
    %246 = vmatpush1.msra.mxu0 0.0
    %247 = vmatprep.subr.mxu0 0.0
    %248 = vmatpush1.msra.mxu0 0.0
    %249 = vmatprep.subr.mxu0 0.0
    %250 = vmatpush1.msra.mxu0 0.0
    %251 = vmatprep.subr.mxu0 0.0
    %252 = vmatpush1.msra.mxu0 0.0
    %253 = vmatprep.subr.mxu0 0.0
    %254 = vmatpush1.msra.mxu0 0.0
    %255 = vmatprep.subr.mxu0 0.0
    %256 = vmatpush1.msra.mxu0 0.0
    %257 = vmatprep.subr.mxu0 0.0
    %258 = vmatpush1.msra.mxu0 0.0
    %259 = vmatprep.subr.mxu0 0.0
    %260 = vmatpush1.msra.mxu0 0.0
    %261 = vmatprep.subr.mxu0 %v48
    %262 = vmatpush1.msra.mxu0 %v47
    %263 = vmatprep.subr.mxu0 %v40
    %264 = vmatpush1.msra.mxu0 %v39
    %265 = vmatprep.subr.mxu0 0.0
    %266 = vmatpush2.msra.mxu0 0.0
    %267 = vmatprep.subr.mxu0 0.0
    %268 = vmatpush2.msra.mxu0 0.0
    %269 = vmatprep.subr.mxu0 0.0
    %270 = vmatpush2.msra.mxu0 0.0
    %271 = vmatprep.subr.mxu0 0.0
    %272 = vmatpush2.msra.mxu0 0.0
    %273 = vmatprep.subr.mxu0 0.0
    %274 = vmatpush2.msra.mxu0 0.0
    %275 = vmatprep.subr.mxu0 0.0
    %276 = vmatpush2.msra.mxu0 0.0
    %277 = vmatprep.subr.mxu0 0.0
    %278 = vmatpush2.msra.mxu0 0.0
    %279 = vmatprep.subr.mxu0 0.0
    %280 = vmatpush2.msra.mxu0 0.0
    %281 = vmatprep.subr.mxu0 0.0
    %282 = vmatpush2.msra.mxu0 0.0
    %283 = vmatprep.subr.mxu0 0.0
    %284 = vmatpush2.msra.mxu0 0.0
    %285 = vmatprep.subr.mxu0 0.0
    %286 = vmatpush2.msra.mxu0 0.0
    %287 = vmatprep.subr.mxu0 0.0
    %288 = vmatpush2.msra.mxu0 0.0
    %289 = vmatprep.subr.mxu0 0.0
    %290 = vmatpush2.msra.mxu0 0.0
    %291 = vmatprep.subr.mxu0 0.0
    %292 = vmatpush2.msra.mxu0 0.0
    %293 = vmatprep.subr.mxu0 0.0
    %294 = vmatpush2.msra.mxu0 0.0
    %295 = vmatprep.subr.mxu0 0.0
    %296 = vmatpush2.msra.mxu0 0.0
    %297 = vmatprep.mubr.f32.mxu0 0.0
    %298 = vmatmul.mubr.f32.gmra.mxu0 %v97
    %v299 = vpop.f32.mrf.mxu0
    %v300 = vadd.f32 %v66, %v299
    %v301 = vpop.f32.mrf.mxu0
    %v302 = vadd.f32 %v70, %v301
    %303 = vmatprep.mubr.f32.mxu0 0.0
    %304 = vmatmul.mubr.f32.gmra.mxu0 %v100
    %v305 = vpop.f32.mrf.mxu0
    %v306 = vadd.f32 %v66, %v305
    %v307 = vpop.f32.mrf.mxu0
    %v308 = vadd.f32 %v70, %v307
    %309 = vmatprep.mubr.f32.mxu0 0.0
    %310 = vmatmul.mubr.f32.gmra.mxu0 %v103
    %v311 = vpop.f32.mrf.mxu0
    %v312 = vadd.f32 %v66, %v311
    %v313 = vpop.f32.mrf.mxu0
    %v314 = vadd.f32 %v70, %v313
    %315 = vmatprep.mubr.f32.mxu0 0.0
    %316 = vmatmul.mubr.f32.gmra.mxu0 %v106
    %v317 = vpop.f32.mrf.mxu0
    %v318 = vadd.f32 %v66, %v317
    %v319 = vpop.f32.mrf.mxu0
    %v320 = vadd.f32 %v70, %v319
    %321 = vmatprep.mubr.f32.mxu0 0.0
    %322 = vmatmul.mubr.f32.gmra.mxu0 %v109
    %v323 = vpop.f32.mrf.mxu0
    %v324 = vadd.f32 %v66, %v323
    %v325 = vpop.f32.mrf.mxu0
    %v326 = vadd.f32 %v70, %v325
    %327 = vmatprep.mubr.f32.mxu0 0.0
    %328 = vmatmul.mubr.f32.gmra.mxu0 %v112
    %v329 = vpop.f32.mrf.mxu0
    %v330 = vadd.f32 %v66, %v329
    %v331 = vpop.f32.mrf.mxu0
    %v332 = vadd.f32 %v70, %v331
    %333 = vmatprep.mubr.f32.mxu0 0.0
    %334 = vmatmul.mubr.f32.gmra.mxu0 %v115
    %v335 = vpop.f32.mrf.mxu0
    %v336 = vadd.f32 %v66, %v335
    %v337 = vpop.f32.mrf.mxu0
    %v338 = vadd.f32 %v70, %v337
    %339 = vmatprep.mubr.f32.mxu0 0.0
    %340 = vmatmul.mubr.f32.gmra.mxu0 %v118
    %v341 = vpop.f32.mrf.mxu0
    %v342 = vadd.f32 %v66, %v341
    %v343 = vpop.f32.mrf.mxu0
    %v344 = vadd.f32 %v70, %v343
    %345 = vdwg.mxu0
    %346 = vmatprep.subr.mxu0 0.0
    %347 = vmatpush1.msra.mxu0 0.0
    %348 = vmatprep.subr.mxu0 0.0
    %349 = vmatpush1.msra.mxu0 0.0
    %350 = vmatprep.subr.mxu0 0.0
    %351 = vmatpush1.msra.mxu0 0.0
    %352 = vmatprep.subr.mxu0 0.0
    %353 = vmatpush1.msra.mxu0 0.0
    %354 = vmatprep.subr.mxu0 0.0
    %355 = vmatpush1.msra.mxu0 0.0
    %356 = vmatprep.subr.mxu0 0.0
    %357 = vmatpush1.msra.mxu0 0.0
    %358 = vmatprep.subr.mxu0 0.0
    %359 = vmatpush1.msra.mxu0 0.0
    %360 = vmatprep.subr.mxu0 0.0
    %361 = vmatpush1.msra.mxu0 0.0
    %362 = vmatprep.subr.mxu0 0.0
    %363 = vmatpush1.msra.mxu0 0.0
    %364 = vmatprep.subr.mxu0 0.0
    %365 = vmatpush1.msra.mxu0 0.0
    %366 = vmatprep.subr.mxu0 0.0
    %367 = vmatpush1.msra.mxu0 0.0
    %368 = vmatprep.subr.mxu0 0.0
    %369 = vmatpush1.msra.mxu0 0.0
    %370 = vmatprep.subr.mxu0 0.0
    %371 = vmatpush1.msra.mxu0 0.0
    %372 = vmatprep.subr.mxu0 0.0
    %373 = vmatpush1.msra.mxu0 0.0
    %374 = vmatprep.subr.mxu0 %v50
    %375 = vmatpush1.msra.mxu0 %v49
    %376 = vmatprep.subr.mxu0 %v42
    %377 = vmatpush1.msra.mxu0 %v41
    %378 = vmatprep.subr.mxu0 0.0
    %379 = vmatpush2.msra.mxu0 0.0
    %380 = vmatprep.subr.mxu0 0.0
    %381 = vmatpush2.msra.mxu0 0.0
    %382 = vmatprep.subr.mxu0 0.0
    %383 = vmatpush2.msra.mxu0 0.0
    %384 = vmatprep.subr.mxu0 0.0
    %385 = vmatpush2.msra.mxu0 0.0
    %386 = vmatprep.subr.mxu0 0.0
    %387 = vmatpush2.msra.mxu0 0.0
    %388 = vmatprep.subr.mxu0 0.0
    %389 = vmatpush2.msra.mxu0 0.0
    %390 = vmatprep.subr.mxu0 0.0
    %391 = vmatpush2.msra.mxu0 0.0
    %392 = vmatprep.subr.mxu0 0.0
    %393 = vmatpush2.msra.mxu0 0.0
    %394 = vmatprep.subr.mxu0 0.0
    %395 = vmatpush2.msra.mxu0 0.0
    %396 = vmatprep.subr.mxu0 0.0
    %397 = vmatpush2.msra.mxu0 0.0
    %398 = vmatprep.subr.mxu0 0.0
    %399 = vmatpush2.msra.mxu0 0.0
    %400 = vmatprep.subr.mxu0 0.0
    %401 = vmatpush2.msra.mxu0 0.0
    %402 = vmatprep.subr.mxu0 0.0
    %403 = vmatpush2.msra.mxu0 0.0
    %404 = vmatprep.subr.mxu0 0.0
    %405 = vmatpush2.msra.mxu0 0.0
    %406 = vmatprep.subr.mxu0 0.0
    %407 = vmatpush2.msra.mxu0 0.0
    %408 = vmatprep.subr.mxu0 0.0
    %409 = vmatpush2.msra.mxu0 0.0
    %410 = vmatprep.mubr.f32.mxu0 0.0
    %411 = vmatmul.mubr.f32.gmra.mxu0 %v97
    %v412 = vpop.f32.mrf.mxu0
    %v413 = vadd.f32 %v74, %v412
    %v414 = vpop.f32.mrf.mxu0
    %v415 = vadd.f32 %v78, %v414
    %416 = vmatprep.mubr.f32.mxu0 0.0
    %417 = vmatmul.mubr.f32.gmra.mxu0 %v100
    %v418 = vpop.f32.mrf.mxu0
    %v419 = vadd.f32 %v74, %v418
    %v420 = vpop.f32.mrf.mxu0
    %v421 = vadd.f32 %v78, %v420
    %422 = vmatprep.mubr.f32.mxu0 0.0
    %423 = vmatmul.mubr.f32.gmra.mxu0 %v103
    %v424 = vpop.f32.mrf.mxu0
    %v425 = vadd.f32 %v74, %v424
    %v426 = vpop.f32.mrf.mxu0
    %v427 = vadd.f32 %v78, %v426
    %428 = vmatprep.mubr.f32.mxu0 0.0
    %429 = vmatmul.mubr.f32.gmra.mxu0 %v106
    %v430 = vpop.f32.mrf.mxu0
    %v431 = vadd.f32 %v74, %v430
    %v432 = vpop.f32.mrf.mxu0
    %v433 = vadd.f32 %v78, %v432
    %434 = vmatprep.mubr.f32.mxu0 0.0
    %435 = vmatmul.mubr.f32.gmra.mxu0 %v109
    %v436 = vpop.f32.mrf.mxu0
    %v437 = vadd.f32 %v74, %v436
    %v438 = vpop.f32.mrf.mxu0
    %v439 = vadd.f32 %v78, %v438
    %440 = vmatprep.mubr.f32.mxu0 0.0
    %441 = vmatmul.mubr.f32.gmra.mxu0 %v112
    %v442 = vpop.f32.mrf.mxu0
    %v443 = vadd.f32 %v74, %v442
    %v444 = vpop.f32.mrf.mxu0
    %v445 = vadd.f32 %v78, %v444
    %446 = vmatprep.mubr.f32.mxu0 0.0
    %447 = vmatmul.mubr.f32.gmra.mxu0 %v115
    %v448 = vpop.f32.mrf.mxu0
    %v449 = vadd.f32 %v74, %v448
    %v450 = vpop.f32.mrf.mxu0
    %v451 = vadd.f32 %v78, %v450
    %452 = vmatprep.mubr.f32.mxu0 0.0
    %453 = vmatmul.mubr.f32.gmra.mxu0 %v118
    %v454 = vpop.f32.mrf.mxu0
    %v455 = vadd.f32 %v74, %v454
    %v456 = vpop.f32.mrf.mxu0
    %v457 = vadd.f32 %v78, %v456
    %458 = vdwg.mxu0
    %459 = vmatprep.subr.mxu0 0.0
    %460 = vmatpush1.msra.mxu0 0.0
    %461 = vmatprep.subr.mxu0 0.0
    %462 = vmatpush1.msra.mxu0 0.0
    %463 = vmatprep.subr.mxu0 0.0
    %464 = vmatpush1.msra.mxu0 0.0
    %465 = vmatprep.subr.mxu0 0.0
    %466 = vmatpush1.msra.mxu0 0.0
    %467 = vmatprep.subr.mxu0 0.0
    %468 = vmatpush1.msra.mxu0 0.0
    %469 = vmatprep.subr.mxu0 0.0
    %470 = vmatpush1.msra.mxu0 0.0
    %471 = vmatprep.subr.mxu0 0.0
    %472 = vmatpush1.msra.mxu0 0.0
    %473 = vmatprep.subr.mxu0 0.0
    %474 = vmatpush1.msra.mxu0 0.0
    %475 = vmatprep.subr.mxu0 0.0
    %476 = vmatpush1.msra.mxu0 0.0
    %477 = vmatprep.subr.mxu0 0.0
    %478 = vmatpush1.msra.mxu0 0.0
    %479 = vmatprep.subr.mxu0 0.0
    %480 = vmatpush1.msra.mxu0 0.0
    %481 = vmatprep.subr.mxu0 0.0
    %482 = vmatpush1.msra.mxu0 0.0
    %483 = vmatprep.subr.mxu0 0.0
    %484 = vmatpush1.msra.mxu0 0.0
    %485 = vmatprep.subr.mxu0 0.0
    %486 = vmatpush1.msra.mxu0 0.0
    %487 = vmatprep.subr.mxu0 %v52
    %488 = vmatpush1.msra.mxu0 %v51
    %489 = vmatprep.subr.mxu0 %v44
    %490 = vmatpush1.msra.mxu0 %v43
    %491 = vmatprep.subr.mxu0 0.0
    %492 = vmatpush2.msra.mxu0 0.0
    %493 = vmatprep.subr.mxu0 0.0
    %494 = vmatpush2.msra.mxu0 0.0
    %495 = vmatprep.subr.mxu0 0.0
    %496 = vmatpush2.msra.mxu0 0.0
    %497 = vmatprep.subr.mxu0 0.0
    %498 = vmatpush2.msra.mxu0 0.0
    %499 = vmatprep.subr.mxu0 0.0
    %500 = vmatpush2.msra.mxu0 0.0
    %501 = vmatprep.subr.mxu0 0.0
    %502 = vmatpush2.msra.mxu0 0.0
    %503 = vmatprep.subr.mxu0 0.0
    %504 = vmatpush2.msra.mxu0 0.0
    %505 = vmatprep.subr.mxu0 0.0
    %506 = vmatpush2.msra.mxu0 0.0
    %507 = vmatprep.subr.mxu0 0.0
    %508 = vmatpush2.msra.mxu0 0.0
    %509 = vmatprep.subr.mxu0 0.0
    %510 = vmatpush2.msra.mxu0 0.0
    %511 = vmatprep.subr.mxu0 0.0
    %512 = vmatpush2.msra.mxu0 0.0
    %513 = vmatprep.subr.mxu0 0.0
    %514 = vmatpush2.msra.mxu0 0.0
    %515 = vmatprep.subr.mxu0 0.0
    %516 = vmatpush2.msra.mxu0 0.0
    %517 = vmatprep.subr.mxu0 0.0
    %518 = vmatpush2.msra.mxu0 0.0
    %519 = vmatprep.subr.mxu0 0.0
    %520 = vmatpush2.msra.mxu0 0.0
    %521 = vmatprep.subr.mxu0 0.0
    %522 = vmatpush2.msra.mxu0 0.0
    %523 = vmatprep.mubr.f32.mxu0 0.0
    %524 = vmatmul.mubr.f32.gmra.mxu0 %v97
    %v525 = vpop.f32.mrf.mxu0
    %v526 = vadd.f32 %v82, %v525
    %v527 = vpop.f32.mrf.mxu0
    %v528 = vadd.f32 %v86, %v527
    %529 = vmatprep.mubr.f32.mxu0 0.0
    %530 = vmatmul.mubr.f32.gmra.mxu0 %v100
    %v531 = vpop.f32.mrf.mxu0
    %v532 = vadd.f32 %v82, %v531
    %v533 = vpop.f32.mrf.mxu0
    %v534 = vadd.f32 %v86, %v533
    %535 = vmatprep.mubr.f32.mxu0 0.0
    %536 = vmatmul.mubr.f32.gmra.mxu0 %v103
    %v537 = vpop.f32.mrf.mxu0
    %v538 = vadd.f32 %v82, %v537
    %v539 = vpop.f32.mrf.mxu0
    %v540 = vadd.f32 %v86, %v539
    %541 = vmatprep.mubr.f32.mxu0 0.0
    %542 = vmatmul.mubr.f32.gmra.mxu0 %v106
    %v543 = vpop.f32.mrf.mxu0
    %v544 = vadd.f32 %v82, %v543
    %v545 = vpop.f32.mrf.mxu0
    %v546 = vadd.f32 %v86, %v545
    %547 = vmatprep.mubr.f32.mxu0 0.0
    %548 = vmatmul.mubr.f32.gmra.mxu0 %v109
    %v549 = vpop.f32.mrf.mxu0
    %v550 = vadd.f32 %v82, %v549
    %v551 = vpop.f32.mrf.mxu0
    %v552 = vadd.f32 %v86, %v551
    %553 = vmatprep.mubr.f32.mxu0 0.0
    %554 = vmatmul.mubr.f32.gmra.mxu0 %v112
    %v555 = vpop.f32.mrf.mxu0
    %v556 = vadd.f32 %v82, %v555
    %v557 = vpop.f32.mrf.mxu0
    %v558 = vadd.f32 %v86, %v557
    %559 = vmatprep.mubr.f32.mxu0 0.0
    %560 = vmatmul.mubr.f32.gmra.mxu0 %v115
    %v561 = vpop.f32.mrf.mxu0
    %v562 = vadd.f32 %v82, %v561
    %v563 = vpop.f32.mrf.mxu0
    %v564 = vadd.f32 %v86, %v563
    %565 = vmatprep.mubr.f32.mxu0 0.0
    %566 = vmatmul.mubr.f32.gmra.mxu0 %v118
    %v567 = vpop.f32.mrf.mxu0
    %v568 = vadd.f32 %v82, %v567
    %v569 = vpop.f32.mrf.mxu0
    %v570 = vadd.f32 %v86, %v569
    %571 = vdwg.mxu0
    %572 = vst [vmem:[#allocation5] sm:$0xff] %v187
    %573 = vst [vmem:[#allocation5 + $0x8] sm:$0xff] %v189
    %574 = vst [vmem:[#allocation5 + $0x10] sm:$0xff] %v300
    %575 = vst [vmem:[#allocation5 + $0x18] sm:$0xff] %v302
    %576 = vst [vmem:[#allocation5 + $0x20] sm:$0xff] %v193
    %577 = vst [vmem:[#allocation5 + $0x28] sm:$0xff] %v195
    %578 = vst [vmem:[#allocation5 + $0x30] sm:$0xff] %v306
    %579 = vst [vmem:[#allocation5 + $0x38] sm:$0xff] %v308
    %580 = vst [vmem:[#allocation5 + $0x40] sm:$0xff] %v199
    %581 = vst [vmem:[#allocation5 + $0x48] sm:$0xff] %v201
    %582 = vst [vmem:[#allocation5 + $0x50] sm:$0xff] %v312
    %583 = vst [vmem:[#allocation5 + $0x58] sm:$0xff] %v314
    %584 = vst [vmem:[#allocation5 + $0x60] sm:$0xff] %v205
    %585 = vst [vmem:[#allocation5 + $0x68] sm:$0xff] %v207
    %586 = vst [vmem:[#allocation5 + $0x70] sm:$0xff] %v318
    %587 = vst [vmem:[#allocation5 + $0x78] sm:$0xff] %v320
    %588 = vst [vmem:[#allocation5 + $0x80] sm:$0xff] %v211
    %589 = vst [vmem:[#allocation5 + $0x88] sm:$0xff] %v213
    %590 = vst [vmem:[#allocation5 + $0x90] sm:$0xff] %v324
    %591 = vst [vmem:[#allocation5 + $0x98] sm:$0xff] %v326
    %592 = vst [vmem:[#allocation5 + $0xa0] sm:$0xff] %v217
    %593 = vst [vmem:[#allocation5 + $0xa8] sm:$0xff] %v219
    %594 = vst [vmem:[#allocation5 + $0xb0] sm:$0xff] %v330
    %595 = vst [vmem:[#allocation5 + $0xb8] sm:$0xff] %v332
    %596 = vst [vmem:[#allocation5 + $0xc0] sm:$0xff] %v223
    %597 = vst [vmem:[#allocation5 + $0xc8] sm:$0xff] %v225
    %598 = vst [vmem:[#allocation5 + $0xd0] sm:$0xff] %v336
    %599 = vst [vmem:[#allocation5 + $0xd8] sm:$0xff] %v338
    %600 = vst [vmem:[#allocation5 + $0xe0] sm:$0xff] %v229
    %601 = vst [vmem:[#allocation5 + $0xe8] sm:$0xff] %v231
    %602 = vst [vmem:[#allocation5 + $0xf0] sm:$0xff] %v342
    %603 = vst [vmem:[#allocation5 + $0xf8] sm:$0xff] %v344
    %s604 = scalar_lea.vmem [#allocation5], 256
    %605 = vst [vmem:[%s604] sm:$0xff] %v413
    %606 = vst [vmem:[%s604 + $0x8] sm:$0xff] %v415
    %607 = vst [vmem:[%s604 + $0x10] sm:$0xff] %v526
    %608 = vst [vmem:[%s604 + $0x18] sm:$0xff] %v528
    %609 = vst [vmem:[%s604 + $0x20] sm:$0xff] %v419
    %610 = vst [vmem:[%s604 + $0x28] sm:$0xff] %v421
    %611 = vst [vmem:[%s604 + $0x30] sm:$0xff] %v532
    %612 = vst [vmem:[%s604 + $0x38] sm:$0xff] %v534
    %613 = vst [vmem:[%s604 + $0x40] sm:$0xff] %v425
    %614 = vst [vmem:[%s604 + $0x48] sm:$0xff] %v427
    %615 = vst [vmem:[%s604 + $0x50] sm:$0xff] %v538
    %616 = vst [vmem:[%s604 + $0x58] sm:$0xff] %v540
    %617 = vst [vmem:[%s604 + $0x60] sm:$0xff] %v431
    %618 = vst [vmem:[%s604 + $0x68] sm:$0xff] %v433
    %619 = vst [vmem:[%s604 + $0x70] sm:$0xff] %v544
    %620 = vst [vmem:[%s604 + $0x78] sm:$0xff] %v546
    %621 = vst [vmem:[%s604 + $0x80] sm:$0xff] %v437
    %622 = vst [vmem:[%s604 + $0x88] sm:$0xff] %v439
    %623 = vst [vmem:[%s604 + $0x90] sm:$0xff] %v550
    %624 = vst [vmem:[%s604 + $0x98] sm:$0xff] %v552
    %625 = vst [vmem:[%s604 + $0xa0] sm:$0xff] %v443
    %626 = vst [vmem:[%s604 + $0xa8] sm:$0xff] %v445
    %627 = vst [vmem:[%s604 + $0xb0] sm:$0xff] %v556
    %628 = vst [vmem:[%s604 + $0xb8] sm:$0xff] %v558
    %629 = vst [vmem:[%s604 + $0xc0] sm:$0xff] %v449
    %630 = vst [vmem:[%s604 + $0xc8] sm:$0xff] %v451
    %631 = vst [vmem:[%s604 + $0xd0] sm:$0xff] %v562
    %632 = vst [vmem:[%s604 + $0xd8] sm:$0xff] %v564
    %633 = vst [vmem:[%s604 + $0xe0] sm:$0xff] %v455
    %634 = vst [vmem:[%s604 + $0xe8] sm:$0xff] %v457
    %635 = vst [vmem:[%s604 + $0xf0] sm:$0xff] %v568
    %636 = vst [vmem:[%s604 + $0xf8] sm:$0xff] %v570
    // Predicated region
    $region18: #{tpu_custom_call.1} parent=1 // pred_check
      _
    $region19: #{tpu_custom_call.1} parent=1 // pred_check_branch
      %638 = sbr.rel (0) target = $region21
    $region20: #{tpu_custom_call.1} parent=1 // pred_region
      %s640 = ssub.s32 8192, 8192
      %641 = vsyncadd [#allocation4], %s640
      %s642 = sshll.u32 [#allocation5], 4
      %s643 = int_to_ptr.vmem [resolvable:$true] %s642
      %648 = dma.vmem_to_hbm [thread:$0]  %s643, 8192, %s3, [#allocation4], 512, 512, 32
    $region21: #{tpu_custom_call.1} parent=1 // pred_fallthru
      _
    // Predicated region
    $region22: #{tpu_custom_call.1} parent=1 // pred_check
      _
    $region23: #{tpu_custom_call.1} parent=1 // pred_check_branch
      %650 = sbr.rel (0) target = $region25
    $region24: #{tpu_custom_call.1} parent=1 // pred_region
      %651 = dma.done [#allocation4], 8192
    $region25: #{tpu_custom_call.1} parent=1 // pred_fallthru
      _
    %652 = vsyncpa [#allocation3], 1
    %653 = vsyncpa [#allocation4], 1

</llo_original>
